<compile_context>
chip_gen: v7x
topology: tpu7x:2x2x1
jax: 0.10.0
libtpu: 0.0.40
codegen_flags: <defaults>
</compile_context>

<pallas_src>
import functools

import numpy as np
import jax
import jax.numpy as jnp
from jax.experimental import pallas as pl
from jax.experimental.pallas import tpu as pltpu


_VMEM_LIMIT_BYTES = 48 * 1024 * 1024   # below v7x's 64 MiB physical; plenty on v5e/v6e
_VMEM_FILL_FRACTION = 0.6              # target <= 60% of the scoped limit for buffers


def _round_up(x, m):
    return ((x + m - 1) // m) * m


def _cdiv(a, b):
    return -(-a // b)


# ----------------------------------------------------------------------------
# Main kernel: batch resident in VMEM, rows gathered in-kernel via one-hot MXU.
# ----------------------------------------------------------------------------
def _quadruplet_resident_kernel(a_ref, p_ref, n_ref, f_ref, batch_ref, out_ref, *,
                                margin1, margin2, t_total, row_tile, batch_rows):
    pid = pl.program_id(0)
    bm = batch_ref[...]                       # (B, D) bf16/f32, resident across the grid

    # Exact one-hot row selectors for this (row_tile,) slice of triplets.
    cols = jax.lax.broadcasted_iota(jnp.int32, (row_tile, batch_rows), 1)
    one = jnp.float32(1.0)
    zero = jnp.float32(0.0)
    oh_a = jnp.where(a_ref[...] == cols, one, zero)
    oh_p = jnp.where(p_ref[...] == cols, one, zero)
    oh_n = jnp.where(n_ref[...] == cols, one, zero)
    oh_f = jnp.where(f_ref[...] == cols, one, zero)

    # (onehot_x - onehot_y) @ batch == batch[x] - batch[y], exactly (values 0/±1).
    sel_ap = (oh_a - oh_p).astype(bm.dtype)
    sel_an = (oh_a - oh_n).astype(bm.dtype)
    sel_nf = (oh_n - oh_f).astype(bm.dtype)
    dap = jnp.dot(sel_ap, bm, preferred_element_type=jnp.float32)
    dan = jnp.dot(sel_an, bm, preferred_element_type=jnp.float32)
    dnf = jnp.dot(sel_nf, bm, preferred_element_type=jnp.float32)

    # torch.norm(x, p=2, dim=-1): (row_tile, D) -> (row_tile, 1)
    d_ap = jnp.sqrt(jnp.sum(dap * dap, axis=-1, keepdims=True))
    d_an = jnp.sqrt(jnp.sum(dan * dan, axis=-1, keepdims=True))
    d_nf = jnp.sqrt(jnp.sum(dnf * dnf, axis=-1, keepdims=True))

    trip = jnp.maximum(d_ap - d_an + margin1, 0.0)
    quad = jnp.maximum(d_ap - d_nf + margin2, 0.0)

    # Mask rows past the true T (the partial last block carries garbage indices).
    row = pid * row_tile + jax.lax.broadcasted_iota(jnp.int32, (row_tile, 1), 0)
    hinge = jnp.where(row < t_total, trip + quad, 0.0)

    # Sublane/lane-dense partial-sum block, one unmasked broadcast store.
    out_ref[...] = jnp.full((1, 8, 128), jnp.sum(hinge), dtype=jnp.float32)


def _resident_vmem_bytes(tile, nrows, d, itemsize):
    dpad = _round_up(d, 128)
    lanes = _round_up(nrows, 128)
    return (2 * _round_up(max(nrows, 8), 8) * dpad * itemsize   # resident batch (x2 buffers)
            + 4 * 2 * tile * 128 * 4                            # four (tile, 1) int32 blocks
            + 7 * tile * lanes * 4                              # one-hots + selector diffs
            + 3 * tile * dpad * 4                               # f32 row-difference tiles
            + 2 * 8 * 128 * 4                                   # partial-sum output block
            + (2 << 20))                                        # slack


# ----------------------------------------------------------------------------
# Fallback kernel: streams pre-gathered (T, D) rows (no padding, masked tail).
# ----------------------------------------------------------------------------
def _quadruplet_streamed_kernel(a_ref, p_ref, n_ref, f_ref, out_ref, *,
                                margin1, margin2, t_total, row_tile):
    pid = pl.program_id(0)
    a = a_ref[...].astype(jnp.float32)
    p = p_ref[...].astype(jnp.float32)
    n = n_ref[...].astype(jnp.float32)
    f = f_ref[...].astype(jnp.float32)

    dap = a - p
    dan = a - n
    dnf = n - f
    d_ap = jnp.sqrt(jnp.sum(dap * dap, axis=-1, keepdims=True))
    d_an = jnp.sqrt(jnp.sum(dan * dan, axis=-1, keepdims=True))
    d_nf = jnp.sqrt(jnp.sum(dnf * dnf, axis=-1, keepdims=True))

    trip = jnp.maximum(d_ap - d_an + margin1, 0.0)
    quad = jnp.maximum(d_ap - d_nf + margin2, 0.0)

    row = pid * row_tile + jax.lax.broadcasted_iota(jnp.int32, (row_tile, 1), 0)
    hinge = jnp.where(row < t_total, trip + quad, 0.0)   # select => NaN-safe garbage tail

    out_ref[...] = jnp.full((1, 8, 128), jnp.sum(hinge), dtype=jnp.float32)


def _quadruplet_loss_streamed(anchors, positives, negatives, fourth_negatives,
                              margin_alpha_1, margin_alpha_2, row_tile=1024):
    t_total, d = anchors.shape
    itemsize = jnp.dtype(anchors.dtype).itemsize
    dpad = _round_up(d, 128)

    budget = int(_VMEM_FILL_FRACTION * _VMEM_LIMIT_BYTES)
    tile = _round_up(min(int(row_tile), _round_up(t_total, 8)), 8)
    while tile > 8 and 4 * 2 * tile * dpad * itemsize > budget:
        tile = _round_up(tile // 2, 8)
    nblk = _cdiv(t_total, tile)

    kernel = functools.partial(
        _quadruplet_streamed_kernel,
        margin1=float(margin_alpha_1), margin2=float(margin_alpha_2),
        t_total=t_total, row_tile=tile)

    in_spec = pl.BlockSpec((tile, d), lambda i: (i, 0))
    out = pl.pallas_call(
        kernel,
        out_shape=jax.ShapeDtypeStruct((nblk, 8, 128), jnp.float32),
        grid_spec=pltpu.PrefetchScalarGridSpec(
            num_scalar_prefetch=0,
            grid=(nblk,),
            in_specs=[in_spec, in_spec, in_spec, in_spec],
            out_specs=pl.BlockSpec((1, 8, 128), lambda i: (i, 0, 0)),
        ),
        compiler_params=pltpu.CompilerParams(
            dimension_semantics=("parallel",),
            vmem_limit_bytes=_VMEM_LIMIT_BYTES),
        cost_estimate=pl.CostEstimate(
            flops=10 * t_total * d,
            transcendentals=3 * t_total,
            bytes_accessed=4 * t_total * d * itemsize + nblk * 8 * 128 * 4),
    )(anchors, positives, negatives, fourth_negatives)

    # mean(trip) + mean(quad) == (sum of all hinge terms) / T (same T for both).
    return jnp.sum(out[:, 0, 0]) / t_total


# ----------------------------------------------------------------------------
# Public entry: batch + index arrays -> scalar loss.
# ----------------------------------------------------------------------------
def quadruplet_loss_pallas(batch, a_idx, p_idx, n_idx, f_idx,
                           margin_alpha_1, margin_alpha_2,
                           row_tile=256, compute_dtype=jnp.bfloat16):
    nrows, d = batch.shape
    t_total = int(np.shape(a_idx)[0])
    if t_total == 0:
        return jnp.float32(0.0)

    if compute_dtype is not None and batch.dtype != compute_dtype:
        batch = batch.astype(compute_dtype)
    itemsize = jnp.dtype(batch.dtype).itemsize

    budget = int(_VMEM_FILL_FRACTION * _VMEM_LIMIT_BYTES)
    tile = _round_up(min(int(row_tile), _round_up(t_total, 8)), 8)
    while tile > 8 and _resident_vmem_bytes(tile, nrows, d, itemsize) > budget:
        tile = _round_up(tile // 2, 8)

    if _resident_vmem_bytes(tile, nrows, d, itemsize) > budget:
        # Batch too large to keep resident: gather once (bf16 halves the bytes)
        # and stream the gathered rows.
        gathered = [jnp.take(batch, jnp.asarray(i, jnp.int32), axis=0)
                    for i in (a_idx, p_idx, n_idx, f_idx)]
        return _quadruplet_loss_streamed(*gathered, margin_alpha_1, margin_alpha_2)

    nblk = _cdiv(t_total, tile)

    def as_idx(x):
        return jnp.asarray(x, dtype=jnp.int32).reshape(-1, 1)

    idx_spec = pl.BlockSpec((tile, 1), lambda i: (i, 0))
    batch_spec = pl.BlockSpec((nrows, d), lambda i: (0, 0))  # fetched once, kept resident

    kernel = functools.partial(
        _quadruplet_resident_kernel,
        margin1=float(margin_alpha_1), margin2=float(margin_alpha_2),
        t_total=t_total, row_tile=tile, batch_rows=nrows)

    out = pl.pallas_call(
        kernel,
        out_shape=jax.ShapeDtypeStruct((nblk, 8, 128), jnp.float32),
        grid_spec=pltpu.PrefetchScalarGridSpec(
            num_scalar_prefetch=0,
            grid=(nblk,),
            in_specs=[idx_spec, idx_spec, idx_spec, idx_spec, batch_spec],
            out_specs=pl.BlockSpec((1, 8, 128), lambda i: (i, 0, 0)),
        ),
        compiler_params=pltpu.CompilerParams(
            dimension_semantics=("parallel",),
            vmem_limit_bytes=_VMEM_LIMIT_BYTES),
        cost_estimate=pl.CostEstimate(
            flops=2 * 3 * t_total * nrows * d + 10 * t_total * d,
            transcendentals=3 * t_total,
            bytes_accessed=nrows * d * itemsize + 4 * t_total * 4 + nblk * 8 * 128 * 4),
    )(as_idx(a_idx), as_idx(p_idx), as_idx(n_idx), as_idx(f_idx), batch)

    return jnp.sum(out[:, 0, 0]) / t_total


# ----------------------------------------------------------------------------
# Host-side glue: deterministic random-triplet batchminer + fourth-negative
# sampling, mirroring Criterion.forward.
# ----------------------------------------------------------------------------
def mine_quadruplets(labels, rng):
    """Returns anchor/positive/negative/fourth-negative index arrays."""
    B = len(labels)
    anchors, positives, negatives = [], [], []
    for i in range(B):
        same = np.where(labels == labels[i])[0]
        same = same[same != i]
        diff = np.where(labels != labels[i])[0]
        if len(same) == 0 or len(diff) == 0:
            continue
        anchors.append(i)
        positives.append(int(rng.choice(same)))
        negatives.append(int(rng.choice(diff)))
    anchors = np.asarray(anchors, dtype=np.int64)
    positives = np.asarray(positives, dtype=np.int64)
    negatives = np.asarray(negatives, dtype=np.int64)
    T = len(anchors)

    neg_col = negatives.reshape(-1, 1)
    neq = neg_col != neg_col.T                       # (T, T) boolean
    idx_pool = np.arange(T)
    fourth = []
    for row in neq:
        cand = idx_pool[row]
        if len(cand) == 0:                           # all negatives identical
            cand = idx_pool
        fourth.append(int(rng.choice(cand)))
    return anchors, positives, negatives, np.asarray(fourth, dtype=np.int64)


def criterion_forward(batch, labels, margin_alpha_1=1.0, margin_alpha_2=0.5,
                      seed=0, row_tile=256, compute_dtype=jnp.bfloat16):
    rng = np.random.default_rng(seed)
    a_idx, p_idx, n_idx, f_idx = mine_quadruplets(np.asarray(labels), rng)
    return quadruplet_loss_pallas(batch, a_idx, p_idx, n_idx, f_idx,
                                  margin_alpha_1, margin_alpha_2,
                                  row_tile=row_tile, compute_dtype=compute_dtype)


def _numpy_ref(a, p, n, f, m1, m2):
    d_ap = np.linalg.norm(a - p, axis=-1)
    d_an = np.linalg.norm(a - n, axis=-1)
    d_nf = np.linalg.norm(n - f, axis=-1)
    return (np.maximum(d_ap - d_an + m1, 0).mean()
            + np.maximum(d_ap - d_nf + m2, 0).mean())


if __name__ == "__main__":
    # ---- end-to-end test mirroring Criterion.forward (bf16 batch in kernel) ----
    B, D = 8, 32
    key = jax.random.PRNGKey(0)
    batch = jax.random.normal(key, (B, D), dtype=jnp.float32)
    batch = batch / jnp.linalg.norm(batch, axis=-1, keepdims=True)
    labels = np.array([0, 0, 1, 1, 2, 2, 3, 3], dtype=np.int32)

    loss = criterion_forward(batch, labels,
                             margin_alpha_1=1.0, margin_alpha_2=0.5, seed=0)
    loss = jax.block_until_ready(loss)

    rng = np.random.default_rng(0)
    a_idx, p_idx, n_idx, f_idx = mine_quadruplets(labels, rng)
    bq = np.asarray(batch.astype(jnp.bfloat16).astype(jnp.float32))  # bf16-quantized ref
    ref = _numpy_ref(bq[a_idx], bq[p_idx], bq[n_idx], bq[f_idx], 1.0, 0.5)
    assert np.allclose(float(loss), ref, rtol=1e-4, atol=1e-4), (float(loss), ref)

    # ---- resident kernel, f32, multi-block with a partial (masked) last block ----
    B2, D2, T2 = 50, 96, 41
    batch2 = jax.random.normal(jax.random.PRNGKey(1), (B2, D2), dtype=jnp.float32)
    rng2 = np.random.default_rng(1)
    a2 = rng2.integers(0, B2, T2)
    p2 = rng2.integers(0, B2, T2)
    n2 = rng2.integers(0, B2, T2)
    f2 = rng2.integers(0, B2, T2)
    loss2 = quadruplet_loss_pallas(batch2, a2, p2, n2, f2, 1.0, 0.5,
                                   row_tile=16, compute_dtype=None)
    loss2 = jax.block_until_ready(loss2)
    b2np = np.asarray(batch2)
    ref2 = _numpy_ref(b2np[a2], b2np[p2], b2np[n2], b2np[f2], 1.0, 0.5)
    assert np.allclose(float(loss2), ref2, rtol=1e-4, atol=1e-4), (float(loss2), ref2)

    # ---- streaming fallback kernel (pre-gathered rows, no pad, masked tail) ----
    T3, D3 = 41, 64
    k1, k2, k3, k4 = jax.random.split(jax.random.PRNGKey(2), 4)
    a3 = jax.random.normal(k1, (T3, D3), dtype=jnp.float32)
    p3 = jax.random.normal(k2, (T3, D3), dtype=jnp.float32)
    n3 = jax.random.normal(k3, (T3, D3), dtype=jnp.float32)
    f3 = jax.random.normal(k4, (T3, D3), dtype=jnp.float32)
    loss3 = _quadruplet_loss_streamed(a3, p3, n3, f3, 1.0, 0.5, row_tile=16)
    loss3 = jax.block_until_ready(loss3)
    ref3 = _numpy_ref(*(np.asarray(x) for x in (a3, p3, n3, f3)), 1.0, 0.5)
    assert np.allclose(float(loss3), ref3, rtol=1e-4, atol=1e-4), (float(loss3), ref3)

    print("KERNEL_OK")
</pallas_src>

<mosaic_0001>
module attributes {stable_mosaic.version = 11 : i64} {
  func.func @_quadruplet_resident_kernel(%arg0: i32, %arg1: memref<8x1xi32, #tpu.memory_space<vmem>>, %arg2: memref<8x1xi32, #tpu.memory_space<vmem>>, %arg3: memref<8x1xi32, #tpu.memory_space<vmem>>, %arg4: memref<8x1xi32, #tpu.memory_space<vmem>>, %arg5: memref<8x32xbf16, #tpu.memory_space<vmem>>, %arg6: memref<1x8x128xf32, #tpu.memory_space<vmem>>) attributes {dimension_semantics = [#tpu.dimension_semantics<parallel>], iteration_bounds = array<i64: 1>, scalar_prefetch = 0 : i64, scratch_operands = 0 : i64, tpu.core_type = #tpu.core_type<tc>, window_params = [{transform_indices = @transform_0, window_bounds = array<i64: 8, 1>}, {transform_indices = @transform_1, window_bounds = array<i64: 8, 1>}, {transform_indices = @transform_2, window_bounds = array<i64: 8, 1>}, {transform_indices = @transform_3, window_bounds = array<i64: 8, 1>}, {pipeline_mode = #tpu.pipeline_mode<synchronous>, transform_indices = @transform_4, window_bounds = array<i64: 8, 32>}, {transform_indices = @transform_5, window_bounds = array<i64: 1, 8, 128>}]} {
    %c0 = arith.constant 0 : index
    %c0_0 = arith.constant 0 : index
    %0 = vector.load %arg5[%c0, %c0_0] : memref<8x32xbf16, #tpu.memory_space<vmem>>, vector<8x32xbf16>
    %1 = tpu.iota {dimensions = array<i32: 1>} : vector<8x8xi32>
    %c0_1 = arith.constant 0 : index
    %c0_2 = arith.constant 0 : index
    %2 = vector.load %arg1[%c0_1, %c0_2] : memref<8x1xi32, #tpu.memory_space<vmem>>, vector<8x1xi32>
    %3 = vector.broadcast %2 : vector<8x1xi32> to vector<8x8xi32>
    %4 = arith.cmpi eq, %3, %1 : vector<8x8xi32>
    %cst = arith.constant 1.000000e+00 : f32
    %cst_3 = arith.constant 0.000000e+00 : f32
    %5 = vector.broadcast %cst : f32 to vector<8x8xf32>
    %6 = vector.broadcast %cst_3 : f32 to vector<8x8xf32>
    %7 = arith.select %4, %5, %6 : vector<8x8xi1>, vector<8x8xf32>
    %c0_4 = arith.constant 0 : index
    %c0_5 = arith.constant 0 : index
    %8 = vector.load %arg2[%c0_4, %c0_5] : memref<8x1xi32, #tpu.memory_space<vmem>>, vector<8x1xi32>
    %9 = vector.broadcast %8 : vector<8x1xi32> to vector<8x8xi32>
    %10 = arith.cmpi eq, %9, %1 : vector<8x8xi32>
    %cst_6 = arith.constant 1.000000e+00 : f32
    %cst_7 = arith.constant 0.000000e+00 : f32
    %11 = vector.broadcast %cst_6 : f32 to vector<8x8xf32>
    %12 = vector.broadcast %cst_7 : f32 to vector<8x8xf32>
    %13 = arith.select %10, %11, %12 : vector<8x8xi1>, vector<8x8xf32>
    %c0_8 = arith.constant 0 : index
    %c0_9 = arith.constant 0 : index
    %14 = vector.load %arg3[%c0_8, %c0_9] : memref<8x1xi32, #tpu.memory_space<vmem>>, vector<8x1xi32>
    %15 = vector.broadcast %14 : vector<8x1xi32> to vector<8x8xi32>
    %16 = arith.cmpi eq, %15, %1 : vector<8x8xi32>
    %cst_10 = arith.constant 1.000000e+00 : f32
    %cst_11 = arith.constant 0.000000e+00 : f32
    %17 = vector.broadcast %cst_10 : f32 to vector<8x8xf32>
    %18 = vector.broadcast %cst_11 : f32 to vector<8x8xf32>
    %19 = arith.select %16, %17, %18 : vector<8x8xi1>, vector<8x8xf32>
    %c0_12 = arith.constant 0 : index
    %c0_13 = arith.constant 0 : index
    %20 = vector.load %arg4[%c0_12, %c0_13] : memref<8x1xi32, #tpu.memory_space<vmem>>, vector<8x1xi32>
    %21 = vector.broadcast %20 : vector<8x1xi32> to vector<8x8xi32>
    %22 = arith.cmpi eq, %21, %1 : vector<8x8xi32>
    %cst_14 = arith.constant 1.000000e+00 : f32
    %cst_15 = arith.constant 0.000000e+00 : f32
    %23 = vector.broadcast %cst_14 : f32 to vector<8x8xf32>
    %24 = vector.broadcast %cst_15 : f32 to vector<8x8xf32>
    %25 = arith.select %22, %23, %24 : vector<8x8xi1>, vector<8x8xf32>
    %26 = arith.subf %7, %13 : vector<8x8xf32>
    %27 = arith.truncf %26 : vector<8x8xf32> to vector<8x8xbf16>
    %28 = arith.subf %7, %19 : vector<8x8xf32>
    %29 = arith.truncf %28 : vector<8x8xf32> to vector<8x8xbf16>
    %30 = arith.subf %19, %25 : vector<8x8xf32>
    %31 = arith.truncf %30 : vector<8x8xf32> to vector<8x8xbf16>
    %cst_16 = arith.constant dense<0.000000e+00> : vector<8x32xf32>
    %32 = tpu.matmul %27, %0, %cst_16 {dimension_numbers = #tpu.dot_dimension_numbers<[1], [0], [0], [1], [0, 0, 1, 1], [], []>} : vector<8x8xbf16>, vector<8x32xbf16>, vector<8x32xf32> -> vector<8x32xf32>
    %cst_17 = arith.constant dense<0.000000e+00> : vector<8x32xf32>
    %33 = tpu.matmul %29, %0, %cst_17 {dimension_numbers = #tpu.dot_dimension_numbers<[1], [0], [0], [1], [0, 0, 1, 1], [], []>} : vector<8x8xbf16>, vector<8x32xbf16>, vector<8x32xf32> -> vector<8x32xf32>
    %cst_18 = arith.constant dense<0.000000e+00> : vector<8x32xf32>
    %34 = tpu.matmul %31, %0, %cst_18 {dimension_numbers = #tpu.dot_dimension_numbers<[1], [0], [0], [1], [0, 0, 1, 1], [], []>} : vector<8x8xbf16>, vector<8x32xbf16>, vector<8x32xf32> -> vector<8x32xf32>
    %35 = arith.mulf %32, %32 : vector<8x32xf32>
    %cst_19 = arith.constant dense<0.000000e+00> : vector<8xf32>
    %36 = vector.multi_reduction <add>, %35, %cst_19 [1] : vector<8x32xf32> to vector<8xf32>
    %37 = vector.shape_cast %36 : vector<8xf32> to vector<8x1xf32>
    %38 = math.sqrt %37 : vector<8x1xf32>
    %39 = arith.mulf %33, %33 : vector<8x32xf32>
    %cst_20 = arith.constant dense<0.000000e+00> : vector<8xf32>
    %40 = vector.multi_reduction <add>, %39, %cst_20 [1] : vector<8x32xf32> to vector<8xf32>
    %41 = vector.shape_cast %40 : vector<8xf32> to vector<8x1xf32>
    %42 = math.sqrt %41 : vector<8x1xf32>
    %43 = arith.mulf %34, %34 : vector<8x32xf32>
    %cst_21 = arith.constant dense<0.000000e+00> : vector<8xf32>
    %44 = vector.multi_reduction <add>, %43, %cst_21 [1] : vector<8x32xf32> to vector<8xf32>
    %45 = vector.shape_cast %44 : vector<8xf32> to vector<8x1xf32>
    %46 = math.sqrt %45 : vector<8x1xf32>
    %47 = arith.subf %38, %42 : vector<8x1xf32>
    %cst_22 = arith.constant 1.000000e+00 : f32
    %48 = vector.broadcast %cst_22 : f32 to vector<8x1xf32>
    %49 = arith.addf %47, %48 : vector<8x1xf32>
    %cst_23 = arith.constant 0.000000e+00 : f32
    %50 = vector.broadcast %cst_23 : f32 to vector<8x1xf32>
    %51 = arith.maximumf %49, %50 : vector<8x1xf32>
    %52 = arith.subf %38, %46 : vector<8x1xf32>
    %cst_24 = arith.constant 5.000000e-01 : f32
    %53 = vector.broadcast %cst_24 : f32 to vector<8x1xf32>
    %54 = arith.addf %52, %53 : vector<8x1xf32>
    %cst_25 = arith.constant 0.000000e+00 : f32
    %55 = vector.broadcast %cst_25 : f32 to vector<8x1xf32>
    %56 = arith.maximumf %54, %55 : vector<8x1xf32>
    %c8_i32 = arith.constant 8 : i32
    %57 = arith.muli %arg0, %c8_i32 : i32
    %58 = tpu.iota {dimensions = array<i32: 0>} : vector<8x1xi32>
    %59 = vector.broadcast %57 : i32 to vector<8x1xi32>
    %60 = arith.addi %59, %58 : vector<8x1xi32>
    %c8_i32_26 = arith.constant 8 : i32
    %61 = vector.broadcast %c8_i32_26 : i32 to vector<8x1xi32>
    %62 = arith.cmpi slt, %60, %61 : vector<8x1xi32>
    %63 = arith.addf %51, %56 : vector<8x1xf32>
    %cst_27 = arith.constant 0.000000e+00 : f32
    %64 = vector.broadcast %cst_27 : f32 to vector<8x1xf32>
    %65 = arith.select %62, %63, %64 : vector<8x1xi1>, vector<8x1xf32>
    %66 = vector.shape_cast %65 : vector<8x1xf32> to vector<1x8x1xf32>
    %cst_28 = arith.constant dense<0.000000e+00> : vector<1xf32>
    %67 = vector.multi_reduction <add>, %66, %cst_28 [1, 2] : vector<1x8x1xf32> to vector<1xf32>
    %68 = vector.shape_cast %67 : vector<1xf32> to vector<1x1x1xf32>
    %69 = vector.extract %68[0, 0, 0] : f32 from vector<1x1x1xf32>
    %70 = vector.broadcast %69 : f32 to vector<1x8x128xf32>
    %c0_29 = arith.constant 0 : index
    %c0_30 = arith.constant 0 : index
    %c0_31 = arith.constant 0 : index
    %71 = vector.load %arg6[%c0_29, %c0_30, %c0_31] : memref<1x8x128xf32, #tpu.memory_space<vmem>>, vector<1x8x128xf32>
    tpu.vector_store %arg6[%c0_29, %c0_30, %c0_31], %70 {strides = array<i32>} : memref<1x8x128xf32, #tpu.memory_space<vmem>>, vector<1x8x128xf32>,
    return
  }
  func.func @transform_0(%arg0: i32) -> (i32, i32) {
    %c0_i32 = arith.constant 0 : i32
    %c0_i32_0 = arith.constant 0 : i32
    return %arg0, %c0_i32 : i32, i32
  }
  func.func @transform_1(%arg0: i32) -> (i32, i32) {
    %c0_i32 = arith.constant 0 : i32
    %c0_i32_0 = arith.constant 0 : i32
    return %arg0, %c0_i32 : i32, i32
  }
  func.func @transform_2(%arg0: i32) -> (i32, i32) {
    %c0_i32 = arith.constant 0 : i32
    %c0_i32_0 = arith.constant 0 : i32
    return %arg0, %c0_i32 : i32, i32
  }
  func.func @transform_3(%arg0: i32) -> (i32, i32) {
    %c0_i32 = arith.constant 0 : i32
    %c0_i32_0 = arith.constant 0 : i32
    return %arg0, %c0_i32 : i32, i32
  }
  func.func @transform_4(%arg0: i32) -> (i32, i32) {
    %c0_i32 = arith.constant 0 : i32
    %c0_i32_0 = arith.constant 0 : i32
    %c0_i32_1 = arith.constant 0 : i32
    return %c0_i32, %c0_i32_0 : i32, i32
  }
  func.func @transform_5(%arg0: i32) -> (i32, i32, i32) {
    %c0_i32 = arith.constant 0 : i32
    %c0_i32_0 = arith.constant 0 : i32
    %c0_i32_1 = arith.constant 0 : i32
    return %arg0, %c0_i32, %c0_i32_0 : i32, i32, i32
  }
}

</mosaic_0001>

<llo_original>
// kernel: tpu_custom_call.1
$region0: #{tpu_custom_call.1}
  #allocation0 [shape = 'u32[]', space=smem, size = 0x4, offset = 0x4, fixed_abs, tag = 'smem constant byte address 0x4 - core index']
  #allocation1 [shape = 'u32[144,128]{1,0:T(1,128)}', space=vmem, size = 0x12000, scoped, tag = 'internal scratch']
  %s0 = inlined_call_operand.vmem [shape: s32[8,1], index: 0, kind: input, shape index: {}]
  %s1 = inlined_call_operand.vmem [shape: s32[8,1], index: 1, kind: input, shape index: {}]
  %s2 = inlined_call_operand.vmem [shape: s32[8,1], index: 2, kind: input, shape index: {}]
  %s3 = inlined_call_operand.vmem [shape: s32[8,1], index: 3, kind: input, shape index: {}]
  %s4 = inlined_call_operand.vmem [shape: bf16[8,32], index: 4, kind: input, shape index: {}]
  %s5 = inlined_call_operand.hbm [shape: f32[1,8,128], index: 5, kind: output, shape index: {}]
  %s6 = sld [smem:[#allocation0]]
  $region30: #{tpu_custom_call.1} parent=0
    _
  %s8 = ssub.s32 1, %s6
  %s9 = scalar_select 0, %s8, %s6
  $region1: #{tpu_custom_call.1} parent=0
    #allocation2 [shape = 'u8[4096]{0}', space=vmem, size = 0x1000, scoped, tag = 'output window, operand 0, single buffered']
    #allocation3 [shape = 's32[1]{0}', space=sflag, size = 0x4, scoped, tag = 'scoped memory for tpu_custom_call.1']
    %10 = vsyncpa [#allocation3], 0
    // Predicated region
    $region2: #{tpu_custom_call.1} parent=1 // pred_check
      _
    $region3: #{tpu_custom_call.1} parent=1 // pred_check_branch
      %12 = sbr.rel (0) target = $region5
    $region4: #{tpu_custom_call.1} parent=1 // pred_region
      _
    $region5: #{tpu_custom_call.1} parent=1 // pred_fallthru
      _
    // Predicated region
    $region6: #{tpu_custom_call.1} parent=1 // pred_check
      _
    $region7: #{tpu_custom_call.1} parent=1 // pred_check_branch
      %14 = sbr.rel (0) target = $region9
    $region8: #{tpu_custom_call.1} parent=1 // pred_region
      _
    $region9: #{tpu_custom_call.1} parent=1 // pred_fallthru
      _
    // Predicated region
    $region10: #{tpu_custom_call.1} parent=1 // pred_check
      _
    $region11: #{tpu_custom_call.1} parent=1 // pred_check_branch
      %16 = sbr.rel (0) target = $region13
    $region12: #{tpu_custom_call.1} parent=1 // pred_region
      _
    $region13: #{tpu_custom_call.1} parent=1 // pred_fallthru
      _
    // Predicated region
    $region14: #{tpu_custom_call.1} parent=1 // pred_check
      _
    $region15: #{tpu_custom_call.1} parent=1 // pred_check_branch
      %18 = sbr.rel (0) target = $region17
    $region16: #{tpu_custom_call.1} parent=1 // pred_region
      _
    $region17: #{tpu_custom_call.1} parent=1 // pred_fallthru
      _
    // Predicated region
    $region18: #{tpu_custom_call.1} parent=1 // pred_check
      _
    $region19: #{tpu_custom_call.1} parent=1 // pred_check_branch
      %20 = sbr.rel (0) target = $region21
    $region20: #{tpu_custom_call.1} parent=1 // pred_region
      _
    $region21: #{tpu_custom_call.1} parent=1 // pred_fallthru
      _
    %v22 = vld [vmem:[%s4] sm:$0xf]
    %v23 = vlaneseq
    %v24 = vand.u32 %v23, 127
    %v25 = vld [vmem:[%s0] sm:$0xff]
    %26 = vset.pattern.permute.xlu0 0
    %27 = vperm.xlu0 %26, %v25
    %v28 = vpop.permute.xlu0 %27
    %vm29 = vcmp.eq.s32.totalorder %v28, %v24
    %v30 = vsel %vm29, 1.0, 0.0
    %v31 = vld [vmem:[%s1] sm:$0xff]
    %32 = vset.pattern.permute.xlu0 0
    %33 = vperm.xlu0 %32, %v31
    %v34 = vpop.permute.xlu0 %33
    %vm35 = vcmp.eq.s32.totalorder %v34, %v24
    %v36 = vsel %vm35, 1.0, 0.0
    %v37 = vld [vmem:[%s2] sm:$0xff]
    %38 = vset.pattern.permute.xlu0 0
    %39 = vperm.xlu0 %38, %v37
    %v40 = vpop.permute.xlu0 %39
    %vm41 = vcmp.eq.s32.totalorder %v40, %v24
    %v42 = vsel %vm41, 1.0, 0.0
    %v43 = vld [vmem:[%s3] sm:$0xff]
    %44 = vset.pattern.permute.xlu0 0
    %45 = vperm.xlu0 %44, %v43
    %v46 = vpop.permute.xlu0 %45
    %vm47 = vcmp.eq.s32.totalorder %v46, %v24
    %v48 = vsel %vm47, 1.0, 0.0
    %v49 = vsub.f32 %v30, %v36
    %v50 = vpack.c.bf16 %v49, %v49
    %v51 = vsub.f32 %v30, %v42
    %v52 = vpack.c.bf16 %v51, %v51
    %v53 = vsub.f32 %v42, %v48
    %v54 = vpack.c.bf16 %v53, %v53
    %vm55 = vcmask 64512
    %v57 = vsel %vm55, %v50, 0
    %vm59 = vcmask 1043456
    %v61 = vsel %vm59, %v22, 0
    %63 = vmatprep.subr.bf16.mxu0 0
    %64 = vmatpush1.bf16.msra.mxu0 %v61
    %65 = vmatprep.subr.bf16.mxu0 0
    %66 = vmatpush1.bf16.msra.mxu0 0
    %67 = vmatprep.subr.bf16.mxu0 0
    %68 = vmatpush1.bf16.msra.mxu0 0
    %69 = vmatprep.subr.bf16.mxu0 0
    %70 = vmatpush1.bf16.msra.mxu0 0
    %71 = vmatprep.subr.bf16.mxu0 0
    %72 = vmatpush1.bf16.msra.mxu0 0
    %73 = vmatprep.subr.bf16.mxu0 0
    %74 = vmatpush1.bf16.msra.mxu0 0
    %75 = vmatprep.subr.bf16.mxu0 0
    %76 = vmatpush1.bf16.msra.mxu0 0
    %77 = vmatprep.subr.bf16.mxu0 0
    %78 = vmatpush1.bf16.msra.mxu0 0
    %79 = vmatprep.subr.bf16.mxu0 0
    %80 = vmatpush1.bf16.msra.mxu0 0
    %81 = vmatprep.subr.bf16.mxu0 0
    %82 = vmatpush1.bf16.msra.mxu0 0
    %83 = vmatprep.subr.bf16.mxu0 0
    %84 = vmatpush1.bf16.msra.mxu0 0
    %85 = vmatprep.subr.bf16.mxu0 0
    %86 = vmatpush1.bf16.msra.mxu0 0
    %87 = vmatprep.subr.bf16.mxu0 0
    %88 = vmatpush1.bf16.msra.mxu0 0
    %89 = vmatprep.subr.bf16.mxu0 0
    %90 = vmatpush1.bf16.msra.mxu0 0
    %91 = vmatprep.subr.bf16.mxu0 0
    %92 = vmatpush1.bf16.msra.mxu0 0
    %93 = vmatprep.subr.bf16.mxu0 0
    %94 = vmatpush1.bf16.msra.mxu0 0
    %95 = vmatprep.mubr.bf16.mxu0 0
    %96 = vmatmul.mubr.bf16.gmra.mrb[0].mxu0 %v57
    %v97 = vpop.f32.mrb[0].mxu0
    %v98 = vadd.f32 0.0, %v97
    %v99 = vpop.f32.mrb[0].mxu0
    %v100 = vpop.f32.mrb[0].mxu0
    %v101 = vpop.f32.mrb[0].mxu0
    %102 = vdwg.mxu0
    %v104 = vsel %vm55, %v52, 0
    %106 = vmatprep.subr.bf16.mxu0 0
    %107 = vmatpush1.bf16.msra.mxu0 %v61
    %108 = vmatprep.subr.bf16.mxu0 0
    %109 = vmatpush1.bf16.msra.mxu0 0
    %110 = vmatprep.subr.bf16.mxu0 0
    %111 = vmatpush1.bf16.msra.mxu0 0
    %112 = vmatprep.subr.bf16.mxu0 0
    %113 = vmatpush1.bf16.msra.mxu0 0
    %114 = vmatprep.subr.bf16.mxu0 0
    %115 = vmatpush1.bf16.msra.mxu0 0
    %116 = vmatprep.subr.bf16.mxu0 0
    %117 = vmatpush1.bf16.msra.mxu0 0
    %118 = vmatprep.subr.bf16.mxu0 0
    %119 = vmatpush1.bf16.msra.mxu0 0
    %120 = vmatprep.subr.bf16.mxu0 0
    %121 = vmatpush1.bf16.msra.mxu0 0
    %122 = vmatprep.subr.bf16.mxu0 0
    %123 = vmatpush1.bf16.msra.mxu0 0
    %124 = vmatprep.subr.bf16.mxu0 0
    %125 = vmatpush1.bf16.msra.mxu0 0
    %126 = vmatprep.subr.bf16.mxu0 0
    %127 = vmatpush1.bf16.msra.mxu0 0
    %128 = vmatprep.subr.bf16.mxu0 0
    %129 = vmatpush1.bf16.msra.mxu0 0
    %130 = vmatprep.subr.bf16.mxu0 0
    %131 = vmatpush1.bf16.msra.mxu0 0
    %132 = vmatprep.subr.bf16.mxu0 0
    %133 = vmatpush1.bf16.msra.mxu0 0
    %134 = vmatprep.subr.bf16.mxu0 0
    %135 = vmatpush1.bf16.msra.mxu0 0
    %136 = vmatprep.subr.bf16.mxu0 0
    %137 = vmatpush1.bf16.msra.mxu0 0
    %138 = vmatprep.mubr.bf16.mxu0 0
    %139 = vmatmul.mubr.bf16.gmra.mrb[0].mxu0 %v104
    %v140 = vpop.f32.mrb[0].mxu0
    %v141 = vadd.f32 0.0, %v140
    %v142 = vpop.f32.mrb[0].mxu0
    %v143 = vpop.f32.mrb[0].mxu0
    %v144 = vpop.f32.mrb[0].mxu0
    %145 = vdwg.mxu0
    %v147 = vsel %vm55, %v54, 0
    %149 = vmatprep.subr.bf16.mxu0 0
    %150 = vmatpush1.bf16.msra.mxu0 %v61
    %151 = vmatprep.subr.bf16.mxu0 0
    %152 = vmatpush1.bf16.msra.mxu0 0
    %153 = vmatprep.subr.bf16.mxu0 0
    %154 = vmatpush1.bf16.msra.mxu0 0
    %155 = vmatprep.subr.bf16.mxu0 0
    %156 = vmatpush1.bf16.msra.mxu0 0
    %157 = vmatprep.subr.bf16.mxu0 0
    %158 = vmatpush1.bf16.msra.mxu0 0
    %159 = vmatprep.subr.bf16.mxu0 0
    %160 = vmatpush1.bf16.msra.mxu0 0
    %161 = vmatprep.subr.bf16.mxu0 0
    %162 = vmatpush1.bf16.msra.mxu0 0
    %163 = vmatprep.subr.bf16.mxu0 0
    %164 = vmatpush1.bf16.msra.mxu0 0
    %165 = vmatprep.subr.bf16.mxu0 0
    %166 = vmatpush1.bf16.msra.mxu0 0
    %167 = vmatprep.subr.bf16.mxu0 0
    %168 = vmatpush1.bf16.msra.mxu0 0
    %169 = vmatprep.subr.bf16.mxu0 0
    %170 = vmatpush1.bf16.msra.mxu0 0
    %171 = vmatprep.subr.bf16.mxu0 0
    %172 = vmatpush1.bf16.msra.mxu0 0
    %173 = vmatprep.subr.bf16.mxu0 0
    %174 = vmatpush1.bf16.msra.mxu0 0
    %175 = vmatprep.subr.bf16.mxu0 0
    %176 = vmatpush1.bf16.msra.mxu0 0
    %177 = vmatprep.subr.bf16.mxu0 0
    %178 = vmatpush1.bf16.msra.mxu0 0
    %179 = vmatprep.subr.bf16.mxu0 0
    %180 = vmatpush1.bf16.msra.mxu0 0
    %181 = vmatprep.mubr.bf16.mxu0 0
    %182 = vmatmul.mubr.bf16.gmra.mrb[0].mxu0 %v147
    %v183 = vpop.f32.mrb[0].mxu0
    %v184 = vadd.f32 0.0, %v183
    %v185 = vpop.f32.mrb[0].mxu0
    %v186 = vpop.f32.mrb[0].mxu0
    %v187 = vpop.f32.mrb[0].mxu0
    %188 = vdwg.mxu0
    %v189 = vmul.f32 %v98, %v98
    %vm190 = vcmask 261120
    %v191 = vsel %vm190, %v189, 0.0
    %192 = vadd.xlane.f32.xlu0 %v191
    %v193 = vpop.xlane.xlu0 %192
    %v194 = vrsqrt.pop %v193
    %v195 = vmul.f32 %v193, %v194
    %vm196 = vcmp.eq.f32.partialorder %v193, inf
    %v197 = vsel %vm196, %v193, %v195
    %vm198 = vcmp.eq.f32.partialorder %v193, 0.0
    %v199 = vand.u32 %v193, 2147483648
    %v200 = vsel %vm198, %v199, %v197
    %v201 = vmul.f32 %v141, %v141
    %v202 = vsel %vm190, %v201, 0.0
    %203 = vadd.xlane.f32.xlu0 %v202
    %v204 = vpop.xlane.xlu0 %203
    %v205 = vrsqrt.pop %v204
    %v206 = vmul.f32 %v204, %v205
    %vm207 = vcmp.eq.f32.partialorder %v204, inf
    %v208 = vsel %vm207, %v204, %v206
    %vm209 = vcmp.eq.f32.partialorder %v204, 0.0
    %v210 = vand.u32 %v204, 2147483648
    %v211 = vsel %vm209, %v210, %v208
    %v212 = vmul.f32 %v184, %v184
    %v213 = vsel %vm190, %v212, 0.0
    %214 = vadd.xlane.f32.xlu0 %v213
    %v215 = vpop.xlane.xlu0 %214
    %v216 = vrsqrt.pop %v215
    %v217 = vmul.f32 %v215, %v216
    %vm218 = vcmp.eq.f32.partialorder %v215, inf
    %v219 = vsel %vm218, %v215, %v217
    %vm220 = vcmp.eq.f32.partialorder %v215, 0.0
    %v221 = vand.u32 %v215, 2147483648
    %v222 = vsel %vm220, %v221, %v219
    %v223 = vsub.f32 %v200, %v211
    %v224 = vadd.f32 %v223, 1.0
    %v225 = vmax.f32 %v224, 0.0
    %v226 = vsub.f32 %v200, %v222
    %v227 = vadd.f32 %v226, 0.5
    %v228 = vmax.f32 %v227, 0.0
    %s229 = smul.u32 0, 8
    %v230 = vlaneseq
    %v231 = vshrl.u32 %v230, 7
    %v232 = vstv %s229
    %v233 = vadd.s32 %v232, %v231
    %vm234 = vcmp.lt.s32.totalorder %v233, 8
    %v235 = vadd.f32 %v225, %v228
    %v236 = vsel %vm234, %v235, 0.0
    %vm237 = vcmask 7168
    %v238 = vsel %vm237, %v236, 0.0
    %239 = vadd.xlane.f32.xlu0 %v238
    %v240 = vpop.xlane.xlu0 %239
    %v241 = vrot.slane %v240, 4
    %v242 = vadd.f32 %v240, %v241
    %v243 = vrot.slane %v242, 2
    %v244 = vadd.f32 %v242, %v243
    %v245 = vrot.slane %v244, 1
    %v246 = vadd.f32 %v244, %v245
    %s247 = vtos %v246
    %v248 = vstv %s247
    %249 = vst [vmem:[#allocation2] sm:$0xff] %v248
    // Predicated region
    $region22: #{tpu_custom_call.1} parent=1 // pred_check
      _
    $region23: #{tpu_custom_call.1} parent=1 // pred_check_branch
      %251 = sbr.rel (0) target = $region25
    $region24: #{tpu_custom_call.1} parent=1 // pred_region
      %s253 = ssub.s32 128, 128
      %254 = vsyncadd [#allocation3], %s253
      %s256 = sshll.u32 [#allocation2], 4
      %s257 = int_to_ptr.vmem [resolvable:$true] %s256
      %259 = dma.vmem_to_hbm [thread:$0]  %s257, 128, %s5, [#allocation3]
    $region25: #{tpu_custom_call.1} parent=1 // pred_fallthru
      _
    // Predicated region
    $region26: #{tpu_custom_call.1} parent=1 // pred_check
      _
    $region27: #{tpu_custom_call.1} parent=1 // pred_check_branch
      %261 = sbr.rel (0) target = $region29
    $region28: #{tpu_custom_call.1} parent=1 // pred_region
      %262 = dma.done [#allocation3], 128
    $region29: #{tpu_custom_call.1} parent=1 // pred_fallthru
      _
    %263 = vsyncpa [#allocation3], 1

</llo_original>
